<compile_context>
chip_gen: v7x
topology: tpu7x:2x2x1
jax: 0.10.0
libtpu: 0.0.40
codegen_flags: <defaults>
</compile_context>

<pallas_src>
import functools

import jax
import jax.numpy as jnp
from jax.experimental import pallas as pl
from jax.experimental.pallas import tpu as pltpu


def _zero_mul_kernel(x_ref, o_ref):
    # Pure elementwise multiply-by-zero on the whole (lane-dense) block.
    o_ref[...] = x_ref[...] * 0.0


@functools.partial(jax.jit, static_argnames=("stride",))
def zero_forward(x, stride=1):
    """Forward of DARTS `Zero(stride)` on an NCHW tensor."""
    if stride != 1:
        # Strided spatial subsampling, identical indexing to
        # x[:, :, ::stride, ::stride] in the PyTorch module.  Done as a free
        # XLA slice in the wrapper; the kernel then applies the .mul(0.0).
        x = x[:, :, ::stride, ::stride]
    n, c, ho, wo = x.shape

    # Lane-dense flattening: (N*C, HO*WO).  For the stride==1 demo shape this
    # is (8, 256) -> 2 full 128-lane vregs per sublane group, unmasked stores.
    rows, cols = n * c, ho * wo
    x2 = x.reshape(rows, cols)

    out = pl.pallas_call(
        _zero_mul_kernel,
        out_shape=jax.ShapeDtypeStruct((rows, cols), x.dtype),
        grid=(1,),  # single grid step: whole problem fits trivially in VMEM
        in_specs=[pl.BlockSpec((rows, cols), lambda i: (0, 0))],
        out_specs=pl.BlockSpec((rows, cols), lambda i: (0, 0)),
        compiler_params=pltpu.CompilerParams(
            dimension_semantics=("arbitrary",)),
    )(x2)

    return out.reshape(n, c, ho, wo)


def ref_forward(x, stride):
    """Pure-JAX reference matching the PyTorch module."""
    if stride == 1:
        return x * 0.0
    return x[:, :, ::stride, ::stride] * 0.0


if __name__ == "__main__":
    key = jax.random.PRNGKey(0)
    x = jax.random.normal(key, (2, 4, 16, 16), jnp.float32)

    # Check both branches of the module: stride=1 (identity shape) and stride=2.
    for stride in (1, 2):
        out = jax.block_until_ready(zero_forward(x, stride=stride))
        ref = ref_forward(x, stride)
        assert out.shape == ref.shape, (stride, out.shape, ref.shape)
        max_err = float(jnp.max(jnp.abs(out - ref)))
        assert max_err == 0.0, f"stride={stride}: mismatch vs reference {max_err}"

    print("KERNEL_OK")
</pallas_src>

<mosaic_0001>
module attributes {stable_mosaic.version = 11 : i64} {
  func.func @_zero_mul_kernel(%arg0: i32, %arg1: memref<8x256xf32, #tpu.memory_space<vmem>>, %arg2: memref<8x256xf32, #tpu.memory_space<vmem>>) attributes {dimension_semantics = [#tpu.dimension_semantics<arbitrary>], iteration_bounds = array<i64: 1>, scalar_prefetch = 0 : i64, scratch_operands = 0 : i64, tpu.core_type = #tpu.core_type<tc>, window_params = [{pipeline_mode = #tpu.pipeline_mode<synchronous>, transform_indices = @transform_0, window_bounds = array<i64: 8, 256>}, {pipeline_mode = #tpu.pipeline_mode<synchronous>, transform_indices = @transform_1, window_bounds = array<i64: 8, 256>}]} {
    %c0 = arith.constant 0 : index
    %c0_0 = arith.constant 0 : index
    %0 = vector.load %arg1[%c0, %c0_0] : memref<8x256xf32, #tpu.memory_space<vmem>>, vector<8x256xf32>
    %cst = arith.constant 0.000000e+00 : f32
    %1 = vector.broadcast %cst : f32 to vector<8x256xf32>
    %2 = arith.mulf %0, %1 : vector<8x256xf32>
    %c0_1 = arith.constant 0 : index
    %c0_2 = arith.constant 0 : index
    %3 = vector.load %arg2[%c0_1, %c0_2] : memref<8x256xf32, #tpu.memory_space<vmem>>, vector<8x256xf32>
    tpu.vector_store %arg2[%c0_1, %c0_2], %2 {strides = array<i32>} : memref<8x256xf32, #tpu.memory_space<vmem>>, vector<8x256xf32>,
    return
  }
  func.func @transform_0(%arg0: i32) -> (i32, i32) {
    %c0_i32 = arith.constant 0 : i32
    %c0_i32_0 = arith.constant 0 : i32
    %c0_i32_1 = arith.constant 0 : i32
    return %c0_i32, %c0_i32_0 : i32, i32
  }
  func.func @transform_1(%arg0: i32) -> (i32, i32) {
    %c0_i32 = arith.constant 0 : i32
    %c0_i32_0 = arith.constant 0 : i32
    %c0_i32_1 = arith.constant 0 : i32
    return %c0_i32, %c0_i32_0 : i32, i32
  }
}

</mosaic_0001>

<llo_original>
// kernel: zero_forward.1
$region0: #{zero_forward.1}
  #allocation0 [shape = 'u32[]', space=smem, size = 0x4, offset = 0x4, fixed_abs, tag = 'smem constant byte address 0x4 - core index']
  #allocation1 [shape = 'u32[144,128]{1,0:T(1,128)}', space=vmem, size = 0x12000, scoped, tag = 'internal scratch']
  %s0 = inlined_call_operand.vmem [shape: f32[8,256], index: 0, kind: input, shape index: {}]
  %s1 = inlined_call_operand.vmem [shape: f32[8,256], index: 1, kind: output, shape index: {}]
  %s2 = sld [smem:[#allocation0]]
  $region14: #{zero_forward.1} parent=0
    _
  %s4 = ssub.s32 1, %s2
  %s5 = scalar_select 0, %s4, %s2
  // Predicated region
  $region2: #{zero_forward.1} parent=0 // pred_check
    _
  $region3: #{zero_forward.1} parent=0 // pred_check_branch
    %7 = sbr.rel (0) target = $region5
  $region4: #{zero_forward.1} parent=0 // pred_region
    _
  $region5: #{zero_forward.1} parent=0 // pred_fallthru
    _
  %v8 = vld [vmem:[%s0] sm:$0xff]
  %v9 = vld [vmem:[%s0 + $0x8] sm:$0xff]
  %v10 = vmul.f32 %v8, 0.0
  %v11 = vmul.f32 %v9, 0.0
  %12 = vst [vmem:[%s1] sm:$0xff] %v10
  %13 = vst [vmem:[%s1 + $0x8] sm:$0xff] %v11
  // Predicated region
  $region6: #{zero_forward.1} parent=0 // pred_check
    _
  $region7: #{zero_forward.1} parent=0 // pred_check_branch
    %15 = sbr.rel (0) target = $region9
  $region8: #{zero_forward.1} parent=0 // pred_region
    _
  $region9: #{zero_forward.1} parent=0 // pred_fallthru
    _
  // Predicated region
  $region10: #{zero_forward.1} parent=0 // pred_check
    _
  $region11: #{zero_forward.1} parent=0 // pred_check_branch
    %17 = sbr.rel (0) target = $region13
  $region12: #{zero_forward.1} parent=0 // pred_region
    _
  $region13: #{zero_forward.1} parent=0 // pred_fallthru
    _

</llo_original>
